<compile_context>
chip_gen: v7x
topology: tpu7x:2x2x1
jax: 0.10.0
libtpu: 0.0.40
codegen_flags: <defaults>
</compile_context>

<pallas_src>
import functools

import jax
import jax.numpy as jnp
from jax import lax
from jax.experimental import pallas as pl
from jax.experimental.pallas import tpu as pltpu

IN_FEATURES = 196608   # fixed by the module definition: Linear(196608, 10)
OUT_FEATURES = 10
N_SPLIT = 2            # split the contraction in two (one half per TC on v7x)
_UNROLL = 2            # manual unroll of the inner chunk loop


def linear_kernel(x_ref, w_ref, o_ref, *, inner):
    """One grid step: o[c] += sum over this tk-slice of x[b,:] * w[n,:]."""
    B, tk = x_ref.shape          # (B, tk)  activations slice (lane-dense)
    N, _ = w_ref.shape           # (N, tk)  weight slice, PyTorch (out, in) layout
    k = pl.program_id(1)

    @pl.when(k == 0)
    def _():
        o_ref[...] = jnp.zeros_like(o_ref)

    n_outer = tk // (inner * _UNROLL)

    def body(i, acc):
        base = i * (inner * _UNROLL)
        for j in range(_UNROLL):
            start = pl.multiple_of(base + j * inner, inner)
            xc = x_ref[:, pl.ds(start, inner)]          # (B, inner)
            wc = w_ref[:, pl.ds(start, inner)]          # (N, inner)
            # lane-dense VPU multiply-accumulate, carried in vregs
            acc = acc + xc[:, None, :] * wc[None, :, :]  # (B, N, inner)
        return acc

    acc = lax.fori_loop(
        0, n_outer, body, jnp.zeros((B, N, inner), jnp.float32)
    )

    # Single cross-lane (XLU) reduction per grid step, accumulate into the
    # VMEM-resident output block.
    o_ref[...] += jnp.sum(acc, axis=-1).astype(o_ref.dtype)


@functools.partial(jax.jit, static_argnames=("tk", "inner"))
def tudui_forward(x, w, b, *, tk=32768, inner=512):
    """y = x @ w.T + b   (x: (B, F), w: (N, F) [PyTorch layout], b: (1, N))."""
    B, F = x.shape
    N, F2 = w.shape
    assert F == F2, "weight in_features mismatch"
    assert F % (N_SPLIT * tk) == 0, "tk must divide F / N_SPLIT"
    assert tk % (inner * _UNROLL) == 0 and inner % 128 == 0
    k_steps = F // (N_SPLIT * tk)

    partials = pl.pallas_call(
        functools.partial(linear_kernel, inner=inner),
        out_shape=jax.ShapeDtypeStruct((N_SPLIT, B, N), jnp.float32),
        grid_spec=pltpu.PrefetchScalarGridSpec(
            num_scalar_prefetch=0,
            grid=(N_SPLIT, k_steps),
            in_specs=[
                # activations: (B, tk) lane-dense slice of the contraction
                pl.BlockSpec((B, tk), lambda c, k: (0, c * k_steps + k)),
                # weights: (N, tk) lane-dense slice (original PyTorch layout)
                pl.BlockSpec((N, tk), lambda c, k: (0, c * k_steps + k)),
            ],
            # per-split partial output, VMEM-resident across the k reduction
            out_specs=pl.BlockSpec((None, B, N), lambda c, k: (c, 0, 0)),
        ),
        compiler_params=pltpu.CompilerParams(
            dimension_semantics=("parallel", "arbitrary"),
            vmem_limit_bytes=32 * 1024 * 1024,
        ),
        cost_estimate=pl.CostEstimate(
            flops=2 * B * F * N,
            transcendentals=0,
            bytes_accessed=(B * F + N * F + B * N) * x.dtype.itemsize,
        ),
    )(x, w)

    # 80-byte epilogue: combine the per-core partials and add the bias once.
    return (partials.sum(axis=0) + b).astype(x.dtype)


def init_params(key):
    """Deterministic init matching nn.Linear default: U(-1/sqrt(fan_in), +)."""
    kw, kb = jax.random.split(key)
    bound = 1.0 / jnp.sqrt(jnp.float32(IN_FEATURES))
    # Keep the PyTorch (out_features, in_features) layout — it is lane-dense.
    w = jax.random.uniform(
        kw, (OUT_FEATURES, IN_FEATURES), jnp.float32, -bound, bound
    )
    b = jax.random.uniform(kb, (1, OUT_FEATURES), jnp.float32, -bound, bound)
    return w, b


if __name__ == "__main__":
    key = jax.random.PRNGKey(0)
    k_x, k_p = jax.random.split(key)

    batch = 2
    x = jax.random.normal(k_x, (batch, IN_FEATURES), jnp.float32)
    w, b = init_params(k_p)

    y = tudui_forward(x, w, b)
    jax.block_until_ready(y)

    # sanity check against plain JAX reference (y = x @ W^T + b)
    y_ref = x @ w.T + b
    assert y.shape == (batch, OUT_FEATURES)
    assert jnp.allclose(y, y_ref, atol=1e-3, rtol=1e-3), float(
        jnp.max(jnp.abs(y - y_ref))
    )

    print("KERNEL_OK")
</pallas_src>

<mosaic_0001>
module attributes {stable_mosaic.version = 11 : i64} {
  func.func @linear_kernel(%arg0: i32, %arg1: i32, %arg2: memref<2x32768xf32, #tpu.memory_space<vmem>>, %arg3: memref<10x32768xf32, #tpu.memory_space<vmem>>, %arg4: memref<1x2x10xf32, #tpu.memory_space<vmem>>) attributes {dimension_semantics = [#tpu.dimension_semantics<parallel>, #tpu.dimension_semantics<arbitrary>], iteration_bounds = array<i64: 2, 3>, scalar_prefetch = 0 : i64, scratch_operands = 0 : i64, tpu.core_type = #tpu.core_type<tc>, window_params = [{transform_indices = @transform_0, window_bounds = array<i64: 2, 32768>}, {transform_indices = @transform_1, window_bounds = array<i64: 10, 32768>}, {transform_indices = @transform_2, window_bounds = array<i64: 1, 2, 10>}]} {
    %c0_i32 = arith.constant 0 : i32
    %0 = arith.cmpi eq, %arg1, %c0_i32 : i32
    %1 = arith.extui %0 : i1 to i32
    %c0_i32_0 = arith.constant 0 : i32
    %2 = arith.cmpi ne, %1, %c0_i32_0 : i32
    scf.if %2 {
      %cst_9 = arith.constant 0.000000e+00 : f32
      %13 = vector.broadcast %cst_9 : f32 to vector<2x10xf32>
      %c0_10 = arith.constant 0 : index
      %c0_11 = arith.constant 0 : index
      %c0_12 = arith.constant 0 : index
      %14 = vector.load %arg4[%c0_10, %c0_11, %c0_12] : memref<1x2x10xf32, #tpu.memory_space<vmem>>, vector<1x2x10xf32>
      %15 = vector.shape_cast %14 : vector<1x2x10xf32> to vector<2x10xf32>
      %16 = vector.shape_cast %13 : vector<2x10xf32> to vector<1x2x10xf32>
      tpu.vector_store %arg4[%c0_10, %c0_11, %c0_12], %16 {strides = array<i32>} : memref<1x2x10xf32, #tpu.memory_space<vmem>>, vector<1x2x10xf32>,
    } else {
    }
    %cst = arith.constant 0.000000e+00 : f32
    %3 = vector.broadcast %cst : f32 to vector<2x10x512xf32>
    %c0_i32_1 = arith.constant 0 : i32
    %c32_i32 = arith.constant 32 : i32
    %4 = arith.addi %c0_i32_1, %c32_i32 : i32
    %c1_i32 = arith.constant 1 : i32
    %5 = scf.for %arg5 = %c0_i32_1 to %4 step %c1_i32 iter_args(%arg6 = %3) -> (vector<2x10x512xf32>)  : i32 {
      %c1024_i32 = arith.constant 1024 : i32
      %13 = arith.muli %arg5, %c1024_i32 : i32
      %c0_i32_9 = arith.constant 0 : i32
      %14 = arith.addi %13, %c0_i32_9 : i32
      %15 = tpu.assume_multiple %14, 512 : i32
      %c0_10 = arith.constant 0 : index
      %16 = arith.index_cast %15 : i32 to index
      %17 = vector.load %arg2[%c0_10, %16] : memref<2x32768xf32, #tpu.memory_space<vmem>>, vector<2x512xf32>
      %c0_11 = arith.constant 0 : index
      %18 = arith.index_cast %15 : i32 to index
      %19 = vector.load %arg3[%c0_11, %18] : memref<10x32768xf32, #tpu.memory_space<vmem>>, vector<10x512xf32>
      %20 = vector.shape_cast %17 : vector<2x512xf32> to vector<2x1x512xf32>
      %21 = vector.shape_cast %19 : vector<10x512xf32> to vector<1x10x512xf32>
      %22 = vector.broadcast %20 : vector<2x1x512xf32> to vector<2x10x512xf32>
      %23 = vector.broadcast %21 : vector<1x10x512xf32> to vector<2x10x512xf32>
      %24 = arith.mulf %22, %23 : vector<2x10x512xf32>
      %25 = arith.addf %arg6, %24 : vector<2x10x512xf32>
      %c512_i32 = arith.constant 512 : i32
      %26 = arith.addi %13, %c512_i32 : i32
      %27 = tpu.assume_multiple %26, 512 : i32
      %c0_12 = arith.constant 0 : index
      %28 = arith.index_cast %27 : i32 to index
      %29 = vector.load %arg2[%c0_12, %28] : memref<2x32768xf32, #tpu.memory_space<vmem>>, vector<2x512xf32>
      %c0_13 = arith.constant 0 : index
      %30 = arith.index_cast %27 : i32 to index
      %31 = vector.load %arg3[%c0_13, %30] : memref<10x32768xf32, #tpu.memory_space<vmem>>, vector<10x512xf32>
      %32 = vector.shape_cast %29 : vector<2x512xf32> to vector<2x1x512xf32>
      %33 = vector.shape_cast %31 : vector<10x512xf32> to vector<1x10x512xf32>
      %34 = vector.broadcast %32 : vector<2x1x512xf32> to vector<2x10x512xf32>
      %35 = vector.broadcast %33 : vector<1x10x512xf32> to vector<2x10x512xf32>
      %36 = arith.mulf %34, %35 : vector<2x10x512xf32>
      %37 = arith.addf %25, %36 : vector<2x10x512xf32>
      scf.yield %37 : vector<2x10x512xf32>
    }
    %c32_i32_2 = arith.constant 32 : i32
    %c0 = arith.constant 0 : index
    %c0_3 = arith.constant 0 : index
    %c0_4 = arith.constant 0 : index
    %6 = vector.load %arg4[%c0, %c0_3, %c0_4] : memref<1x2x10xf32, #tpu.memory_space<vmem>>, vector<1x2x10xf32>
    %7 = vector.shape_cast %6 : vector<1x2x10xf32> to vector<2x10xf32>
    %cst_5 = arith.constant dense<0.000000e+00> : vector<2x10xf32>
    %8 = vector.multi_reduction <add>, %5, %cst_5 [2] : vector<2x10x512xf32> to vector<2x10xf32>
    %9 = arith.addf %7, %8 : vector<2x10xf32>
    %c0_6 = arith.constant 0 : index
    %c0_7 = arith.constant 0 : index
    %c0_8 = arith.constant 0 : index
    %10 = vector.load %arg4[%c0_6, %c0_7, %c0_8] : memref<1x2x10xf32, #tpu.memory_space<vmem>>, vector<1x2x10xf32>
    %11 = vector.shape_cast %10 : vector<1x2x10xf32> to vector<2x10xf32>
    %12 = vector.shape_cast %9 : vector<2x10xf32> to vector<1x2x10xf32>
    tpu.vector_store %arg4[%c0_6, %c0_7, %c0_8], %12 {strides = array<i32>} : memref<1x2x10xf32, #tpu.memory_space<vmem>>, vector<1x2x10xf32>,
    return
  }
  func.func @transform_0(%arg0: i32, %arg1: i32) -> (i32, i32) {
    %c3_i32 = arith.constant 3 : i32
    %0 = arith.muli %arg0, %c3_i32 : i32
    %1 = arith.addi %0, %arg1 : i32
    %c0_i32 = arith.constant 0 : i32
    %c0_i32_0 = arith.constant 0 : i32
    return %c0_i32, %1 : i32, i32
  }
  func.func @transform_1(%arg0: i32, %arg1: i32) -> (i32, i32) {
    %c3_i32 = arith.constant 3 : i32
    %0 = arith.muli %arg0, %c3_i32 : i32
    %1 = arith.addi %0, %arg1 : i32
    %c0_i32 = arith.constant 0 : i32
    %c0_i32_0 = arith.constant 0 : i32
    return %c0_i32, %1 : i32, i32
  }
  func.func @transform_2(%arg0: i32, %arg1: i32) -> (i32, i32, i32) {
    %c0_i32 = arith.constant 0 : i32
    %c0_i32_0 = arith.constant 0 : i32
    %c0_i32_1 = arith.constant 0 : i32
    return %arg0, %c0_i32, %c0_i32_0 : i32, i32, i32
  }
}

</mosaic_0001>

<llo_original>
// kernel: tudui_forward.1
$region0: #{tudui_forward.1}
  #allocation0 [shape = 'u32[]', space=smem, size = 0x4, offset = 0x4, fixed_abs, tag = 'smem constant byte address 0x4 - core index']
  #allocation1 [shape = 'u32[144,128]{1,0:T(1,128)}', space=vmem, size = 0x12000, scoped, tag = 'internal scratch']
  %s0 = inlined_call_operand.hbm [shape: f32[2,196608], index: 0, kind: input, shape index: {}]
  %s1 = inlined_call_operand.hbm [shape: f32[10,196608], index: 1, kind: input, shape index: {}]
  %s2 = inlined_call_operand.vmem [shape: f32[2,2,10], index: 2, kind: output, shape index: {}]
  %s3 = sld [smem:[#allocation0]]
  $region60: #{tudui_forward.1} parent=0
    _
  %s5 = ssub.s32 1, %s3
  %s6 = scalar_select 0, %s5, %s3
  $region1: #{tudui_forward.1} parent=0
    #allocation2 [shape = 'u8[524288]{0}', space=vmem, size = 0x80000, scoped, tag = 'input window, operand 0']
    #allocation3 [shape = 's32[2]{0}', space=sflag, size = 0x8, scoped, tag = 'scoped memory for tudui_forward.1']
    #allocation4 [shape = 'u8[4194304]{0}', space=vmem, size = 0x400000, scoped, tag = 'input window, operand 1']
    #allocation5 [shape = 's32[2]{0}', space=sflag, size = 0x8, scoped, tag = 'scoped memory for tudui_forward.1']
    %7 = vsyncpa [#allocation3], 0
    %s8 = scalar_lea.sflag [#allocation3], 1
    %9 = vsyncpa %s8, 0
    %10 = vsyncpa [#allocation5], 0
    %s11 = scalar_lea.sflag [#allocation5], 1
    %12 = vsyncpa %s11, 0
    loop: start=0, step=1, limit=8
    $region2: #{tudui_forward.1} parent=1 // loop_pre_header
      _
    $region3: #{tudui_forward.1} parent=1 // loop_header
      %s14 = sphi 0, %s18
      %p15 = scmp.ge.s32.totalorder %s14, 8
      %s21 = sphi 0, %s33
      %s22 = sphi 0, %s29
      %s23 = sphi 0, %s21
      %s24 = sphi 0, %s22
      %s25 = sphi 0, %s23
      %s26 = sphi 0, %s24
      %s40 = sphi 0, %s42
      %s43 = sphi 0, %s40
      %s44 = sphi 0, %s43
      %s60 = sphi 0, %s44
      %s70 = sphi 0, %s72
      %s73 = sphi 0, %s70
      %s74 = sphi 0, %s73
      %s90 = sphi 0, %s74
      %s96 = sphi 0, %s98
      %s99 = sphi 0, %s96
      %s100 = sphi 0, %s99
      %s116 = sphi 0, %s100
    $region4: #{tudui_forward.1} parent=1 // loop_header_branch
      %17 = sbr.rel (%p15) target = $region8
    $region5: #{tudui_forward.1} parent=1 // loop_body
      %s19 = ssub.s32 %s14, 1
      %s20 = ssub.s32 %s14, 2
      %s27 = sadd.s32 1, %s22
      %p28 = scmp.ge.s32.totalorder %s27, 3
      %s29 = scalar_select %p28, 0, %s27
      %s30 = sadd.s32 1, %s21
      %s31 = scalar_select %p28, %s30, %s21
      %p32 = scmp.ge.s32.totalorder %s31, 2
      %s33 = scalar_select %p32, 0, %s31
      %s34 = smul.u32 %s21, 3
      %s35 = sadd.s32 %s34, %s22
      %s36 = smul.u32 %s33, 3
      %s37 = sadd.s32 %s36, %s29
      %s38 = ssub.s32 %s35, %s37
      %p39 = scmp.eq.s32.totalorder %s38, 0
      %s41 = sadd.s32 %s40, 1
      %s42 = scalar_select %p39, %s40, %s41
      %p45 = pneg %p39
      %p46 = scmp.eq.s32.totalorder %s14, 5
      %p47 = por %p45, %p46
      %p48 = scmp.ne.s32.totalorder %s40, %s43
      %p49 = scmp.eq.s32.totalorder %s14, 0
      %p50 = por %p48, %p49
      %p51 = scmp.ne.s32.totalorder %s40, %s43
      %p52 = scmp.eq.s32.totalorder %s19, 5
      %p53 = por %p51, %p52
      %p54 = scmp.ne.s32.totalorder %s43, %s44
      %p55 = scmp.eq.s32.totalorder %s19, 0
      %p56 = por %p54, %p55
      %p57 = scmp.ne.s32.totalorder %s43, %s44
      %p58 = scmp.eq.s32.totalorder %s20, 5
      %p59 = por %p57, %p58
      %p61 = scmp.ne.s32.totalorder %s44, %s60
      %p62 = scmp.eq.s32.totalorder %s20, 0
      %p63 = por %p61, %p62
      %s64 = smul.u32 %s21, 3
      %s65 = sadd.s32 %s64, %s22
      %s66 = smul.u32 %s33, 3
      %s67 = sadd.s32 %s66, %s29
      %s68 = ssub.s32 %s65, %s67
      %p69 = scmp.eq.s32.totalorder %s68, 0
      %s71 = sadd.s32 %s70, 1
      %s72 = scalar_select %p69, %s70, %s71
      %p75 = pneg %p69
      %p76 = scmp.eq.s32.totalorder %s14, 5
      %p77 = por %p75, %p76
      %p78 = scmp.ne.s32.totalorder %s70, %s73
      %p79 = scmp.eq.s32.totalorder %s14, 0
      %p80 = por %p78, %p79
      %p81 = scmp.ne.s32.totalorder %s70, %s73
      %p82 = scmp.eq.s32.totalorder %s19, 5
      %p83 = por %p81, %p82
      %p84 = scmp.ne.s32.totalorder %s73, %s74
      %p85 = scmp.eq.s32.totalorder %s19, 0
      %p86 = por %p84, %p85
      %p87 = scmp.ne.s32.totalorder %s73, %s74
      %p88 = scmp.eq.s32.totalorder %s20, 5
      %p89 = por %p87, %p88
      %p91 = scmp.ne.s32.totalorder %s74, %s90
      %p92 = scmp.eq.s32.totalorder %s20, 0
      %p93 = por %p91, %p92
      %s94 = ssub.s32 %s21, %s33
      %p95 = scmp.eq.s32.totalorder %s94, 0
      %s97 = sadd.s32 %s96, 1
      %s98 = scalar_select %p95, %s96, %s97
      %p101 = pneg %p95
      %p102 = scmp.eq.s32.totalorder %s14, 5
      %p103 = por %p101, %p102
      %p104 = scmp.ne.s32.totalorder %s96, %s99
      %p105 = scmp.eq.s32.totalorder %s14, 0
      %p106 = por %p104, %p105
      %p107 = scmp.ne.s32.totalorder %s96, %s99
      %p108 = scmp.eq.s32.totalorder %s19, 5
      %p109 = por %p107, %p108
      %p110 = scmp.ne.s32.totalorder %s99, %s100
      %p111 = scmp.eq.s32.totalorder %s19, 0
      %p112 = por %p110, %p111
      %p113 = scmp.ne.s32.totalorder %s99, %s100
      %p114 = scmp.eq.s32.totalorder %s20, 5
      %p115 = por %p113, %p114
      %p117 = scmp.ne.s32.totalorder %s100, %s116
      %p118 = scmp.eq.s32.totalorder %s20, 0
      %p119 = por %p117, %p118
      %p120 = scmp.le.s32.totalorder 1, %s14
      %p121 = scmp.lt.s32.totalorder %s14, 7
      %p122 = pnand %p120, %p121
      %p123 = pneg %p122
      // Predicated region
      $region9: #{tudui_forward.1} parent=5 // pred_check
        _
      $region10: #{tudui_forward.1} parent=5 // pred_check_branch
        %125 = sbr.rel (%p122) target = $region12
      $region11: #{tudui_forward.1} parent=5 // pred_region
        %s126 = ssub.s32 %s14, 1
      $region12: #{tudui_forward.1} parent=5 // pred_fallthru
        _
      %p127 = scmp.lt.s32.totalorder %s14, 6
      // Predicated region
      $region13: #{tudui_forward.1} parent=5 // pred_check
        %p128 = pneg %p127
      $region14: #{tudui_forward.1} parent=5 // pred_check_branch
        %130 = sbr.rel (%p128) target = $region16
      $region15: #{tudui_forward.1} parent=5 // pred_region
        // Predicated region
        $region17: #{tudui_forward.1} parent=15 // pred_check
          %p131 = pneg %p50
        $region18: #{tudui_forward.1} parent=15 // pred_check_branch
          %133 = sbr.rel (%p131) target = $region20
        $region19: #{tudui_forward.1} parent=15 // pred_region
          %s134 = sand.u32 %s40, 1
          %s135 = scalar_lea.sflag [#allocation3], %s134
          %s136 = sand.u32 %s40, 1
          %s137 = smul.addr %s136, 512
          %s138 = scalar_lea.vmem [#allocation2], %s137
          %s139 = smul.u32 %s21, 3
          %s140 = sadd.s32 %s139, %s22
          %s141 = smul.u32 256, %s140
          %s143 = ssub.s32 8192, 8192
          %144 = vsyncadd %s135, %s143
          %s145 = smul.addr %s141, 32
          %s146 = scalar_lea.hbm %s0, %s145
          %s148 = sshll.u32 %s138, 4
          %s149 = int_to_ptr.vmem [resolvable:$true] %s148
          %151 = dma.hbm_to_vmem [thread:$0]  %s146, 8192, %s149, %s135
        $region20: #{tudui_forward.1} parent=15 // pred_fallthru
          _
        // Predicated region
        $region21: #{tudui_forward.1} parent=15 // pred_check
          %p152 = pneg %p80
        $region22: #{tudui_forward.1} parent=15 // pred_check_branch
          %154 = sbr.rel (%p152) target = $region24
        $region23: #{tudui_forward.1} parent=15 // pred_region
          %s155 = sand.u32 %s70, 1
          %s156 = scalar_lea.sflag [#allocation5], %s155
          %s157 = sand.u32 %s70, 1
          %s158 = smul.addr %s157, 4096
          %s159 = scalar_lea.vmem [#allocation4], %s158
          %s160 = smul.u32 %s21, 3
          %s161 = sadd.s32 %s160, %s22
          %s162 = smul.u32 256, %s161
          %s164 = ssub.s32 65536, 65536
          %165 = vsyncadd %s156, %s164
          %s166 = smul.addr %s162, 128
          %s167 = scalar_lea.hbm %s1, %s166
          %s168 = sshll.u32 %s159, 4
          %s169 = int_to_ptr.vmem [resolvable:$true] %s168
          %174 = dma.hbm_to_vmem [thread:$0]  %s167, 65536, %s169, %s156, 196608, 32768, 2048
        $region24: #{tudui_forward.1} parent=15 // pred_fallthru
          _
      $region16: #{tudui_forward.1} parent=5 // pred_fallthru
        _
      %p175 = scmp.le.s32.totalorder 1, %s14
      %p176 = scmp.lt.s32.totalorder %s14, 7
      %p177 = pnand %p175, %p176
      %p178 = pneg %p177
      // Predicated region
      $region25: #{tudui_forward.1} parent=5 // pred_check
        _
      $region26: #{tudui_forward.1} parent=5 // pred_check_branch
        %180 = sbr.rel (%p177) target = $region28
      $region27: #{tudui_forward.1} parent=5 // pred_region
        %s181 = ssub.s32 %s14, 1
        %s182 = sand.u32 %s43, 1
        %s183 = scalar_lea.sflag [#allocation3], %s182
        %s184 = sand.u32 %s43, 1
        %s185 = smul.addr %s184, 512
        %s186 = scalar_lea.vmem [#allocation2], %s185
        // Predicated region
        $region29: #{tudui_forward.1} parent=27 // pred_check
          %p187 = pneg %p56
        $region30: #{tudui_forward.1} parent=27 // pred_check_branch
          %189 = sbr.rel (%p187) target = $region32
        $region31: #{tudui_forward.1} parent=27 // pred_region
          %190 = dma.done %s183, 8192
        $region32: #{tudui_forward.1} parent=27 // pred_fallthru
          _
        %s191 = sand.u32 %s73, 1
        %s192 = scalar_lea.sflag [#allocation5], %s191
        %s193 = sand.u32 %s73, 1
        %s194 = smul.addr %s193, 4096
        %s195 = scalar_lea.vmem [#allocation4], %s194
        // Predicated region
        $region33: #{tudui_forward.1} parent=27 // pred_check
          %p196 = pneg %p86
        $region34: #{tudui_forward.1} parent=27 // pred_check_branch
          %198 = sbr.rel (%p196) target = $region36
        $region35: #{tudui_forward.1} parent=27 // pred_region
          %199 = dma.done %s192, 65536
        $region36: #{tudui_forward.1} parent=27 // pred_fallthru
          _
        %s200 = sand.u32 %s43, 1
        %s201 = scalar_lea.sflag [#allocation3], %s200
        %s202 = sand.u32 %s43, 1
        %s203 = smul.addr %s202, 512
        %s204 = scalar_lea.vmem [#allocation2], %s203
        %p205 = pneg %p56
        %p206 = pneg %p53
        %s207 = sand.u32 %s73, 1
        %s208 = scalar_lea.sflag [#allocation5], %s207
        %s209 = sand.u32 %s73, 1
        %s210 = smul.addr %s209, 4096
        %s211 = scalar_lea.vmem [#allocation4], %s210
        %p212 = pneg %p86
        %p213 = pneg %p83
        %p214 = pneg %p112
        %p215 = pneg %p109
        %p216 = scmp.lt.s32.totalorder %s23, 1
        %s217 = scalar_select %p216, %s23, 1
        %s218 = smul.addr %s217, 2
        %s219 = scalar_lea.vmem %s2, %s218
        %s220 = smul.u32 %s23, 3
        %s221 = sadd.s32 %s220, %s24
        %s222 = smul.u32 256, %s221
        %s223 = smul.u32 %s23, 3
        %s224 = sadd.s32 %s223, %s24
        %s225 = smul.u32 256, %s224
        %p226 = scmp.lt.s32.totalorder %s23, 1
        %s227 = scalar_select %p226, %s23, 1
        %s228 = smul.addr %s227, 2
        %s229 = scalar_lea.vmem %s2, %s228
        %p230 = scmp.eq.s32.totalorder %s24, 0
        // Predicated region
        $region37: #{tudui_forward.1} parent=27 // pred_check
          %p231 = pneg %p230
        $region38: #{tudui_forward.1} parent=27 // pred_check_branch
          %233 = sbr.rel (%p231) target = $region40
        $region39: #{tudui_forward.1} parent=27 // pred_region
          %vm234 = vcmask 74752
          %235 = vst.msk [vmem:[%s229] sm:$0x3] %vm234, 0.0
        $region40: #{tudui_forward.1} parent=27 // pred_fallthru
          _
        loop: start=0, step=1, limit=32
        $region41: #{tudui_forward.1} parent=27 // loop_pre_header
          _
        $region42: #{tudui_forward.1} parent=27 // loop_header
          %s237 = sphi 0, %s241
          %p238 = scmp.ge.s32.totalorder %s237, 32
          %v242 = vphi 0.0, %v436
          %v243 = vphi 0.0, %v437
          %v244 = vphi 0.0, %v438
          %v245 = vphi 0.0, %v439
          %v246 = vphi 0.0, %v440
          %v247 = vphi 0.0, %v441
          %v248 = vphi 0.0, %v442
          %v249 = vphi 0.0, %v443
          %v250 = vphi 0.0, %v444
          %v251 = vphi 0.0, %v445
          %v252 = vphi 0.0, %v446
          %v253 = vphi 0.0, %v447
          %v254 = vphi 0.0, %v448
          %v255 = vphi 0.0, %v449
          %v256 = vphi 0.0, %v450
          %v257 = vphi 0.0, %v451
        $region43: #{tudui_forward.1} parent=27 // loop_header_branch
          %240 = sbr.rel (%p238) target = $region47
        $region44: #{tudui_forward.1} parent=27 // loop_body
          %s258 = smul.u32 %s237, 1024
          %s259 = sshra.s32 %s258, 7
          %s260 = sand.u32 %s258, 127
          %s261 = smul.addr %s259, 2
          %s262 = scalar_lea.vmem %s186, %s261 [#allocation2]
          %v263 = vld [vmem:[%s262] sm:$0xff]
          %s264 = smul.addr %s259, 8
          %s265 = scalar_lea.vmem %s195, %s264 [#allocation4]
          %v266 = vld [vmem:[%s265] sm:$0xff]
          %v267 = vld [vmem:[%s265 + $0x8] sm:$0xff]
          %v268 = vld [vmem:[%s265 + $0x10] sm:$0xff]
          %v269 = vld [vmem:[%s265 + $0x18] sm:$0xff]
          %v270 = vld [vmem:[%s265 + $0x800] sm:$0x3]
          %v271 = vld [vmem:[%s265 + $0x808] sm:$0x3]
          %v272 = vld [vmem:[%s265 + $0x810] sm:$0x3]
          %v273 = vld [vmem:[%s265 + $0x818] sm:$0x3]
          %v276 = vunpack.c.l.s4 1966171168
          %v277 = vunpack.c.0.s8 %v276
          %v278 = vlaneseq
          %v279 = vshrl.u32 %v278, 7
          %v280 = vsub.s32 %v277, %v279
          %v281 = vrot.slane %v263, %v280
          %v282 = vcombine.high %v281, %v281
          %v283 = vlaneseq
          %v284 = vshrl.u32 %v283, 7
          %v285 = vsub.s32 0, %v284
          %v286 = vrot.slane %v281, %v285
          %v287 = vlaneseq
          %v288 = vshrl.u32 %v287, 7
          %v289 = vsub.s32 1, %v288
          %v290 = vrot.slane %v281, %v289
          %v291 = vlaneseq
          %v292 = vshrl.u32 %v291, 7
          %v293 = vsub.s32 2, %v292
          %v294 = vrot.slane %v281, %v293
          %v295 = vlaneseq
          %v296 = vshrl.u32 %v295, 7
          %v297 = vsub.s32 3, %v296
          %v298 = vrot.slane %v281, %v297
          %v299 = vlaneseq
          %v300 = vshrl.u32 %v299, 7
          %v301 = vsub.s32 0, %v300
          %v302 = vrot.slane %v282, %v301
          %v303 = vlaneseq
          %v304 = vshrl.u32 %v303, 7
          %v305 = vsub.s32 1, %v304
          %v306 = vrot.slane %v282, %v305
          %v307 = vlaneseq
          %v308 = vshrl.u32 %v307, 7
          %v309 = vsub.s32 2, %v308
          %v310 = vrot.slane %v282, %v309
          %v311 = vlaneseq
          %v312 = vshrl.u32 %v311, 7
          %v313 = vsub.s32 3, %v312
          %v314 = vrot.slane %v282, %v313
          %v323 = vmul.f32 %v286, %v266
          %v324 = vmul.f32 %v290, %v267
          %v325 = vmul.f32 %v294, %v268
          %v326 = vmul.f32 %v298, %v269
          %v327 = vmul.f32 %v286, %v270
          %v328 = vmul.f32 %v290, %v271
          %v329 = vmul.f32 %v294, %v272
          %v330 = vmul.f32 %v298, %v273
          %v331 = vmul.f32 %v302, %v266
          %v332 = vmul.f32 %v306, %v267
          %v333 = vmul.f32 %v310, %v268
          %v334 = vmul.f32 %v314, %v269
          %v335 = vmul.f32 %v302, %v270
          %v336 = vmul.f32 %v306, %v271
          %v337 = vmul.f32 %v310, %v272
          %v338 = vmul.f32 %v314, %v273
          %v339 = vadd.f32 %v242, %v323
          %v340 = vadd.f32 %v243, %v324
          %v341 = vadd.f32 %v244, %v325
          %v342 = vadd.f32 %v245, %v326
          %v343 = vadd.f32 %v246, %v327
          %v344 = vadd.f32 %v247, %v328
          %v345 = vadd.f32 %v248, %v329
          %v346 = vadd.f32 %v249, %v330
          %v347 = vadd.f32 %v250, %v331
          %v348 = vadd.f32 %v251, %v332
          %v349 = vadd.f32 %v252, %v333
          %v350 = vadd.f32 %v253, %v334
          %v351 = vadd.f32 %v254, %v335
          %v352 = vadd.f32 %v255, %v336
          %v353 = vadd.f32 %v256, %v337
          %v354 = vadd.f32 %v257, %v338
          %s355 = sadd.s32 %s258, 512
          %s356 = sshra.s32 %s355, 7
          %s357 = sand.u32 %s355, 127
          %s358 = smul.addr %s356, 2
          %s359 = scalar_lea.vmem %s186, %s358 [#allocation2]
          %v360 = vld [vmem:[%s359] sm:$0xff]
          %s361 = smul.addr %s356, 8
          %s362 = scalar_lea.vmem %s195, %s361 [#allocation4]
          %v363 = vld [vmem:[%s362] sm:$0xff]
          %v364 = vld [vmem:[%s362 + $0x8] sm:$0xff]
          %v365 = vld [vmem:[%s362 + $0x10] sm:$0xff]
          %v366 = vld [vmem:[%s362 + $0x18] sm:$0xff]
          %v367 = vld [vmem:[%s362 + $0x800] sm:$0x3]
          %v368 = vld [vmem:[%s362 + $0x808] sm:$0x3]
          %v369 = vld [vmem:[%s362 + $0x810] sm:$0x3]
          %v370 = vld [vmem:[%s362 + $0x818] sm:$0x3]
          %v373 = vunpack.c.l.s4 1966171168
          %v374 = vunpack.c.0.s8 %v373
          %v375 = vlaneseq
          %v376 = vshrl.u32 %v375, 7
          %v377 = vsub.s32 %v374, %v376
          %v378 = vrot.slane %v360, %v377
          %v379 = vcombine.high %v378, %v378
          %v380 = vlaneseq
          %v381 = vshrl.u32 %v380, 7
          %v382 = vsub.s32 0, %v381
          %v383 = vrot.slane %v378, %v382
          %v384 = vlaneseq
          %v385 = vshrl.u32 %v384, 7
          %v386 = vsub.s32 1, %v385
          %v387 = vrot.slane %v378, %v386
          %v388 = vlaneseq
          %v389 = vshrl.u32 %v388, 7
          %v390 = vsub.s32 2, %v389
          %v391 = vrot.slane %v378, %v390
          %v392 = vlaneseq
          %v393 = vshrl.u32 %v392, 7
          %v394 = vsub.s32 3, %v393
          %v395 = vrot.slane %v378, %v394
          %v396 = vlaneseq
          %v397 = vshrl.u32 %v396, 7
          %v398 = vsub.s32 0, %v397
          %v399 = vrot.slane %v379, %v398
          %v400 = vlaneseq
          %v401 = vshrl.u32 %v400, 7
          %v402 = vsub.s32 1, %v401
          %v403 = vrot.slane %v379, %v402
          %v404 = vlaneseq
          %v405 = vshrl.u32 %v404, 7
          %v406 = vsub.s32 2, %v405
          %v407 = vrot.slane %v379, %v406
          %v408 = vlaneseq
          %v409 = vshrl.u32 %v408, 7
          %v410 = vsub.s32 3, %v409
          %v411 = vrot.slane %v379, %v410
          %v420 = vmul.f32 %v383, %v363
          %v421 = vmul.f32 %v387, %v364
          %v422 = vmul.f32 %v391, %v365
          %v423 = vmul.f32 %v395, %v366
          %v424 = vmul.f32 %v383, %v367
          %v425 = vmul.f32 %v387, %v368
          %v426 = vmul.f32 %v391, %v369
          %v427 = vmul.f32 %v395, %v370
          %v428 = vmul.f32 %v399, %v363
          %v429 = vmul.f32 %v403, %v364
          %v430 = vmul.f32 %v407, %v365
          %v431 = vmul.f32 %v411, %v366
          %v432 = vmul.f32 %v399, %v367
          %v433 = vmul.f32 %v403, %v368
          %v434 = vmul.f32 %v407, %v369
          %v435 = vmul.f32 %v411, %v370
          %v436 = vadd.f32 %v339, %v420
          %v437 = vadd.f32 %v340, %v421
          %v438 = vadd.f32 %v341, %v422
          %v439 = vadd.f32 %v342, %v423
          %v440 = vadd.f32 %v343, %v424
          %v441 = vadd.f32 %v344, %v425
          %v442 = vadd.f32 %v345, %v426
          %v443 = vadd.f32 %v346, %v427
          %v444 = vadd.f32 %v347, %v428
          %v445 = vadd.f32 %v348, %v429
          %v446 = vadd.f32 %v349, %v430
          %v447 = vadd.f32 %v350, %v431
          %v448 = vadd.f32 %v351, %v432
          %v449 = vadd.f32 %v352, %v433
          %v450 = vadd.f32 %v353, %v434
          %v451 = vadd.f32 %v354, %v435
        $region45: #{tudui_forward.1} parent=27 // loop_footer
          %s241 = sadd.s32 1, %s237
        $region46: #{tudui_forward.1} parent=27 // loop_footer_branch
          %236 = sbr.rel target = $region42
        $region47: #{tudui_forward.1} parent=27 // loop_exit
          _
        %v452 = vld [vmem:[%s229] sm:$0x3]
        %v453 = vadd.f32 %v242, %v243
        %v454 = vadd.f32 %v453, %v244
        %v455 = vadd.f32 %v454, %v245
        %456 = vadd.xlane.f32.xlu0 %v455
        %v457 = vpop.xlane.xlu0 %456
        %vm458 = vcmask 1041408
        %v459 = vsel %vm458, %v246, 0.0
        %v460 = vsel %vm458, %v247, 0.0
        %v461 = vadd.f32 %v459, %v460
        %v462 = vsel %vm458, %v248, 0.0
        %v463 = vadd.f32 %v461, %v462
        %v464 = vsel %vm458, %v249, 0.0
        %v465 = vadd.f32 %v463, %v464
        %466 = vadd.xlane.f32.xlu0 %v465
        %v467 = vpop.xlane.xlu0 %466
        %v468 = vadd.f32 %v250, %v251
        %v469 = vadd.f32 %v468, %v252
        %v470 = vadd.f32 %v469, %v253
        %471 = vadd.xlane.f32.xlu0 %v470
        %v472 = vpop.xlane.xlu0 %471
        %v473 = vsel %vm458, %v254, 0.0
        %v474 = vsel %vm458, %v255, 0.0
        %v475 = vadd.f32 %v473, %v474
        %v476 = vsel %vm458, %v256, 0.0
        %v477 = vadd.f32 %v475, %v476
        %v478 = vsel %vm458, %v257, 0.0
        %v479 = vadd.f32 %v477, %v478
        %480 = vadd.xlane.f32.xlu0 %v479
        %v481 = vpop.xlane.xlu0 %480
        %v486 = vlaneseq
        %v487 = vand.u32 %v486, 127
        %v488 = vlaneseq
        %v489 = vshrl.u32 %v488, 7
        %v490 = vsub.s32 %v487, %v489
        %v491 = vrot.slane %v457, %v490
        %v492 = vadd.s32 %v487, 4294967288
        %v493 = vlaneseq
        %v494 = vshrl.u32 %v493, 7
        %v495 = vsub.s32 %v492, %v494
        %v496 = vrot.slane %v467, %v495
        %vm497 = vcmask 130112
        %v498 = vsel %vm497, %v496, %v491
        %v499 = vlaneseq
        %v500 = vshrl.u32 %v499, 7
        %v501 = vsub.s32 %v487, %v500
        %v502 = vrot.slane %v472, %v501
        %v503 = vlaneseq
        %v504 = vshrl.u32 %v503, 7
        %v505 = vsub.s32 %v492, %v504
        %v506 = vrot.slane %v481, %v505
        %v507 = vsel %vm497, %v506, %v502
        %vm508 = vcmask 1041409
        %v509 = vsel %vm508, %v507, %v498
        %v511 = vadd.f32 %v452, %v509
        %vm512 = vcmask 74752
        %513 = vst.msk [vmem:[%s229] sm:$0x3] %vm512, %v511
        %p514 = scmp.lt.s32.totalorder %s23, 1
        %s515 = scalar_select %p514, %s23, 1
        %s516 = smul.addr %s515, 2
        %s517 = scalar_lea.vmem %s2, %s516
        // Predicated region
        $region48: #{tudui_forward.1} parent=27 // pred_check
          %p518 = pneg %p109
        $region49: #{tudui_forward.1} parent=27 // pred_check_branch
          %520 = sbr.rel (%p518) target = $region51
        $region50: #{tudui_forward.1} parent=27 // pred_region
          _
        $region51: #{tudui_forward.1} parent=27 // pred_fallthru
          _
      $region28: #{tudui_forward.1} parent=5 // pred_fallthru
        _
      %p521 = scmp.le.s32.totalorder 2, %s14
      // Predicated region
      $region52: #{tudui_forward.1} parent=5 // pred_check
        %p522 = pneg %p521
      $region53: #{tudui_forward.1} parent=5 // pred_check_branch
        %524 = sbr.rel (%p522) target = $region55
      $region54: #{tudui_forward.1} parent=5 // pred_region
        %s525 = ssub.s32 %s14, 2
        // Predicated region
        $region56: #{tudui_forward.1} parent=54 // pred_check
          %p526 = pneg %p115
        $region57: #{tudui_forward.1} parent=54 // pred_check_branch
          %528 = sbr.rel (%p526) target = $region59
        $region58: #{tudui_forward.1} parent=54 // pred_region
          %p529 = scmp.lt.s32.totalorder %s25, 1
          %s530 = scalar_select %p529, %s25, 1
          %s531 = smul.addr %s530, 2
          %s532 = scalar_lea.vmem %s2, %s531
        $region59: #{tudui_forward.1} parent=54 // pred_fallthru
          _
      $region55: #{tudui_forward.1} parent=5 // pred_fallthru
        _
    $region6: #{tudui_forward.1} parent=1 // loop_footer
      %s18 = sadd.s32 1, %s14
    $region7: #{tudui_forward.1} parent=1 // loop_footer_branch
      %13 = sbr.rel target = $region3
    $region8: #{tudui_forward.1} parent=1 // loop_exit
      _
    %533 = vsyncpa [#allocation3], 1
    %s534 = scalar_lea.sflag [#allocation3], 1
    %535 = vsyncpa %s534, 1
    %536 = vsyncpa [#allocation5], 1
    %s537 = scalar_lea.sflag [#allocation5], 1
    %538 = vsyncpa %s537, 1

</llo_original>
